<compile_context>
chip_gen: v7x
topology: tpu7x:2x2x1
jax: 0.10.0
libtpu: 0.0.40
codegen_flags: <defaults>
</compile_context>

<pallas_src>
import jax
import jax.numpy as jnp
from jax.experimental import pallas as pl
from jax.experimental.pallas import tpu as pltpu


def _fused_conv_kernel(x_ref, w1_ref, b1_ref, w2_ref, b2_ref, o_ref):
    # x_ref: (1, Cin, T)   w1: (Cout, Cin)   b1: (Cout, 1)
    # w2: (Cout, Cout)     b2: (Cout, 1)     o_ref: (1, Cout, T)
    x = x_ref[0]                      # (Cin, T)
    w1 = w1_ref[...]
    w2 = w2_ref[...]
    cin = x.shape[0]
    cout = w1.shape[0]
    t = x.shape[1]

    # layer 1: 1x1 conv (per-pixel channel mix) + ReLU, as VPU broadcast-FMAs
    y = jnp.broadcast_to(b1_ref[...], (cout, t))
    for k in range(cin):
        y = y + w1[:, k:k + 1] * x[k:k + 1, :]
    y = jnp.maximum(y, 0.0)

    # layer 2: 1x1 conv + Hardtanh (default clamp [-1, 1])
    z = jnp.broadcast_to(b2_ref[...], (cout, t))
    for k in range(cout):
        z = z + w2[:, k:k + 1] * y[k:k + 1, :]
    o_ref[0] = jnp.clip(z, -1.0, 1.0).astype(o_ref.dtype)


def _fused_conv_call(x_cr, w1, b1, w2, b2, tile):
    # x_cr: (N, Cin, Rpad) channel-major, lane-dense (pixels on lanes)
    n, cin, rpad = x_cr.shape
    cout = w1.shape[0]
    grid = (n, rpad // tile)
    return pl.pallas_call(
        _fused_conv_kernel,
        out_shape=jax.ShapeDtypeStruct((n, cout, rpad), x_cr.dtype),
        grid=grid,
        in_specs=[
            pl.BlockSpec((1, cin, tile), lambda i, j: (i, 0, j)),
            pl.BlockSpec((cout, cin), lambda i, j: (0, 0)),
            pl.BlockSpec((cout, 1), lambda i, j: (0, 0)),
            pl.BlockSpec((cout, cout), lambda i, j: (0, 0)),
            pl.BlockSpec((cout, 1), lambda i, j: (0, 0)),
        ],
        out_specs=pl.BlockSpec((1, cout, tile), lambda i, j: (i, 0, j)),
        compiler_params=pltpu.CompilerParams(
            dimension_semantics=("parallel", "parallel"),
            vmem_limit_bytes=32 * 1024 * 1024,
        ),
        cost_estimate=pl.CostEstimate(
            flops=2 * n * rpad * (cin * cout + cout * cout),
            transcendentals=0,
            bytes_accessed=4 * n * rpad * (cin + cout),
        ),
    )(x_cr, w1, b1.reshape(cout, 1), w2, b2.reshape(cout, 1))


def init_params(key):
    k1, k2, k3, k4 = jax.random.split(key, 4)
    # conv : in=3, out=8, 1x1  (weight stored as (Cout, Cin), PyTorch-style)
    w1 = jax.random.normal(k1, (8, 3), jnp.float32) * 0.5
    b1 = jax.random.normal(k2, (8,), jnp.float32) * 0.5
    # conv_2 : in=8 (adjusted, see TODO above), out=8, 1x1
    w2 = jax.random.normal(k3, (8, 8), jnp.float32) * 0.5
    b2 = jax.random.normal(k4, (8,), jnp.float32) * 0.5
    return w1, b1, w2, b2


def model_forward(x, params):
    """x: (N, 3, H, W) NCHW -> (N, 8, H+4, W+4) NCHW."""
    w1, b1, w2, b2 = params
    n, cin, h, w = x.shape
    cout = w1.shape[0]

    # Border rings are constants (1x1 convs over zero padding):
    outer = jnp.clip(b2, -1.0, 1.0)                                   # (8,)
    inner = jnp.clip(w2 @ jnp.maximum(b1, 0.0) + b2, -1.0, 1.0)       # (8,)

    # Interior: fused conv1+ReLU+conv2+Hardtanh over the real pixels,
    # channel-major / lane-dense (no NCHW<->NHWC transposes needed).
    r = h * w
    lane = 128
    tile = min(pl.cdiv(r, lane) * lane, 2048)
    rpad = pl.cdiv(r, tile) * tile
    x_cr = x.reshape(n, cin, r)
    if rpad != r:
        x_cr = jnp.pad(x_cr, ((0, 0), (0, 0), (0, rpad - r)))
    z = _fused_conv_call(x_cr, w1, b1, w2, b2, tile)                  # (n,8,rpad)
    z = z[:, :, :r].reshape(n, cout, h, w)

    # Assemble final (H+4, W+4) output: outer ring, inner ring, interior.
    hp, wp = h + 4, w + 4
    out = jnp.broadcast_to(outer.reshape(1, cout, 1, 1), (n, cout, hp, wp))
    inner_blk = jnp.broadcast_to(inner.reshape(1, cout, 1, 1),
                                 (n, cout, h + 2, w + 2))
    out = out.at[:, :, 1:hp - 1, 1:wp - 1].set(inner_blk)
    out = out.at[:, :, 2:hp - 2, 2:wp - 2].set(z)
    return out


def reference_forward(x, params):
    """Pure-JAX reference mirroring the PyTorch module semantics."""
    w1, b1, w2, b2 = params
    xp = jnp.pad(x, ((0, 0), (0, 0), (1, 1), (1, 1)))
    v1 = jnp.einsum('oc,nchw->nohw', w1, xp) + b1.reshape(1, -1, 1, 1)
    v2 = jnp.maximum(v1, 0.0)
    yp = jnp.pad(v2, ((0, 0), (0, 0), (1, 1), (1, 1)))
    v3 = jnp.einsum('oc,nchw->nohw', w2, yp) + b2.reshape(1, -1, 1, 1)
    return jnp.clip(v3, -1.0, 1.0)


if __name__ == "__main__":
    key = jax.random.PRNGKey(0)
    kx, kp = jax.random.split(key)

    # Small NCHW input consistent with the module (channels must be 3).
    x1 = jax.random.normal(kx, (2, 3, 16, 16), jnp.float32)
    params = init_params(kp)

    fwd = jax.jit(model_forward)
    out = jax.block_until_ready(fwd(x1, params))

    ref = reference_forward(x1, params)
    assert out.shape == (2, 8, 20, 20), out.shape
    assert jnp.allclose(out, ref, atol=1e-5, rtol=1e-5)

    print("KERNEL_OK")
</pallas_src>

<mosaic_0001>
module attributes {stable_mosaic.version = 11 : i64} {
  func.func @_fused_conv_kernel(%arg0: i32, %arg1: i32, %arg2: memref<1x3x256xf32, #tpu.memory_space<vmem>>, %arg3: memref<8x3xf32, #tpu.memory_space<vmem>>, %arg4: memref<8x1xf32, #tpu.memory_space<vmem>>, %arg5: memref<8x8xf32, #tpu.memory_space<vmem>>, %arg6: memref<8x1xf32, #tpu.memory_space<vmem>>, %arg7: memref<1x8x256xf32, #tpu.memory_space<vmem>>) attributes {dimension_semantics = [#tpu.dimension_semantics<parallel>, #tpu.dimension_semantics<parallel>], iteration_bounds = array<i64: 2, 1>, scalar_prefetch = 0 : i64, scratch_operands = 0 : i64, tpu.core_type = #tpu.core_type<tc>, window_params = [{transform_indices = @transform_0, window_bounds = array<i64: 1, 3, 256>}, {pipeline_mode = #tpu.pipeline_mode<synchronous>, transform_indices = @transform_1, window_bounds = array<i64: 8, 3>}, {pipeline_mode = #tpu.pipeline_mode<synchronous>, transform_indices = @transform_2, window_bounds = array<i64: 8, 1>}, {pipeline_mode = #tpu.pipeline_mode<synchronous>, transform_indices = @transform_3, window_bounds = array<i64: 8, 8>}, {pipeline_mode = #tpu.pipeline_mode<synchronous>, transform_indices = @transform_4, window_bounds = array<i64: 8, 1>}, {transform_indices = @transform_5, window_bounds = array<i64: 1, 8, 256>}]} {
    %c0 = arith.constant 0 : index
    %c0_0 = arith.constant 0 : index
    %c0_1 = arith.constant 0 : index
    %0 = vector.load %arg2[%c0, %c0_0, %c0_1] : memref<1x3x256xf32, #tpu.memory_space<vmem>>, vector<1x3x256xf32>
    %1 = vector.shape_cast %0 : vector<1x3x256xf32> to vector<3x256xf32>
    %c0_2 = arith.constant 0 : index
    %c0_3 = arith.constant 0 : index
    %2 = vector.load %arg3[%c0_2, %c0_3] : memref<8x3xf32, #tpu.memory_space<vmem>>, vector<8x3xf32>
    %c0_4 = arith.constant 0 : index
    %c0_5 = arith.constant 0 : index
    %3 = vector.load %arg5[%c0_4, %c0_5] : memref<8x8xf32, #tpu.memory_space<vmem>>, vector<8x8xf32>
    %c0_6 = arith.constant 0 : index
    %c0_7 = arith.constant 0 : index
    %4 = vector.load %arg4[%c0_6, %c0_7] : memref<8x1xf32, #tpu.memory_space<vmem>>, vector<8x1xf32>
    %5 = vector.shape_cast %4 : vector<8x1xf32> to vector<8x1xf32>
    %6 = vector.broadcast %5 : vector<8x1xf32> to vector<8x256xf32>
    %7 = vector.extract_strided_slice %2 {offsets = [0, 0], sizes = [8, 1], strides = [1, 1]} : vector<8x3xf32> to vector<8x1xf32>
    %8 = vector.extract_strided_slice %1 {offsets = [0, 0], sizes = [1, 256], strides = [1, 1]} : vector<3x256xf32> to vector<1x256xf32>
    %9 = vector.broadcast %7 : vector<8x1xf32> to vector<8x256xf32>
    %10 = vector.broadcast %8 : vector<1x256xf32> to vector<8x256xf32>
    %11 = arith.mulf %9, %10 : vector<8x256xf32>
    %12 = arith.addf %6, %11 : vector<8x256xf32>
    %13 = vector.extract_strided_slice %2 {offsets = [0, 1], sizes = [8, 1], strides = [1, 1]} : vector<8x3xf32> to vector<8x1xf32>
    %14 = vector.extract_strided_slice %1 {offsets = [1, 0], sizes = [1, 256], strides = [1, 1]} : vector<3x256xf32> to vector<1x256xf32>
    %15 = vector.broadcast %13 : vector<8x1xf32> to vector<8x256xf32>
    %16 = vector.broadcast %14 : vector<1x256xf32> to vector<8x256xf32>
    %17 = arith.mulf %15, %16 : vector<8x256xf32>
    %18 = arith.addf %12, %17 : vector<8x256xf32>
    %19 = vector.extract_strided_slice %2 {offsets = [0, 2], sizes = [8, 1], strides = [1, 1]} : vector<8x3xf32> to vector<8x1xf32>
    %20 = vector.extract_strided_slice %1 {offsets = [2, 0], sizes = [1, 256], strides = [1, 1]} : vector<3x256xf32> to vector<1x256xf32>
    %21 = vector.broadcast %19 : vector<8x1xf32> to vector<8x256xf32>
    %22 = vector.broadcast %20 : vector<1x256xf32> to vector<8x256xf32>
    %23 = arith.mulf %21, %22 : vector<8x256xf32>
    %24 = arith.addf %18, %23 : vector<8x256xf32>
    %cst = arith.constant 0.000000e+00 : f32
    %25 = vector.broadcast %cst : f32 to vector<8x256xf32>
    %26 = arith.maximumf %24, %25 : vector<8x256xf32>
    %c0_8 = arith.constant 0 : index
    %c0_9 = arith.constant 0 : index
    %27 = vector.load %arg6[%c0_8, %c0_9] : memref<8x1xf32, #tpu.memory_space<vmem>>, vector<8x1xf32>
    %28 = vector.shape_cast %27 : vector<8x1xf32> to vector<8x1xf32>
    %29 = vector.broadcast %28 : vector<8x1xf32> to vector<8x256xf32>
    %30 = vector.extract_strided_slice %3 {offsets = [0, 0], sizes = [8, 1], strides = [1, 1]} : vector<8x8xf32> to vector<8x1xf32>
    %31 = vector.extract_strided_slice %26 {offsets = [0, 0], sizes = [1, 256], strides = [1, 1]} : vector<8x256xf32> to vector<1x256xf32>
    %32 = vector.broadcast %30 : vector<8x1xf32> to vector<8x256xf32>
    %33 = vector.broadcast %31 : vector<1x256xf32> to vector<8x256xf32>
    %34 = arith.mulf %32, %33 : vector<8x256xf32>
    %35 = arith.addf %29, %34 : vector<8x256xf32>
    %36 = vector.extract_strided_slice %3 {offsets = [0, 1], sizes = [8, 1], strides = [1, 1]} : vector<8x8xf32> to vector<8x1xf32>
    %37 = vector.extract_strided_slice %26 {offsets = [1, 0], sizes = [1, 256], strides = [1, 1]} : vector<8x256xf32> to vector<1x256xf32>
    %38 = vector.broadcast %36 : vector<8x1xf32> to vector<8x256xf32>
    %39 = vector.broadcast %37 : vector<1x256xf32> to vector<8x256xf32>
    %40 = arith.mulf %38, %39 : vector<8x256xf32>
    %41 = arith.addf %35, %40 : vector<8x256xf32>
    %42 = vector.extract_strided_slice %3 {offsets = [0, 2], sizes = [8, 1], strides = [1, 1]} : vector<8x8xf32> to vector<8x1xf32>
    %43 = vector.extract_strided_slice %26 {offsets = [2, 0], sizes = [1, 256], strides = [1, 1]} : vector<8x256xf32> to vector<1x256xf32>
    %44 = vector.broadcast %42 : vector<8x1xf32> to vector<8x256xf32>
    %45 = vector.broadcast %43 : vector<1x256xf32> to vector<8x256xf32>
    %46 = arith.mulf %44, %45 : vector<8x256xf32>
    %47 = arith.addf %41, %46 : vector<8x256xf32>
    %48 = vector.extract_strided_slice %3 {offsets = [0, 3], sizes = [8, 1], strides = [1, 1]} : vector<8x8xf32> to vector<8x1xf32>
    %49 = vector.extract_strided_slice %26 {offsets = [3, 0], sizes = [1, 256], strides = [1, 1]} : vector<8x256xf32> to vector<1x256xf32>
    %50 = vector.broadcast %48 : vector<8x1xf32> to vector<8x256xf32>
    %51 = vector.broadcast %49 : vector<1x256xf32> to vector<8x256xf32>
    %52 = arith.mulf %50, %51 : vector<8x256xf32>
    %53 = arith.addf %47, %52 : vector<8x256xf32>
    %54 = vector.extract_strided_slice %3 {offsets = [0, 4], sizes = [8, 1], strides = [1, 1]} : vector<8x8xf32> to vector<8x1xf32>
    %55 = vector.extract_strided_slice %26 {offsets = [4, 0], sizes = [1, 256], strides = [1, 1]} : vector<8x256xf32> to vector<1x256xf32>
    %56 = vector.broadcast %54 : vector<8x1xf32> to vector<8x256xf32>
    %57 = vector.broadcast %55 : vector<1x256xf32> to vector<8x256xf32>
    %58 = arith.mulf %56, %57 : vector<8x256xf32>
    %59 = arith.addf %53, %58 : vector<8x256xf32>
    %60 = vector.extract_strided_slice %3 {offsets = [0, 5], sizes = [8, 1], strides = [1, 1]} : vector<8x8xf32> to vector<8x1xf32>
    %61 = vector.extract_strided_slice %26 {offsets = [5, 0], sizes = [1, 256], strides = [1, 1]} : vector<8x256xf32> to vector<1x256xf32>
    %62 = vector.broadcast %60 : vector<8x1xf32> to vector<8x256xf32>
    %63 = vector.broadcast %61 : vector<1x256xf32> to vector<8x256xf32>
    %64 = arith.mulf %62, %63 : vector<8x256xf32>
    %65 = arith.addf %59, %64 : vector<8x256xf32>
    %66 = vector.extract_strided_slice %3 {offsets = [0, 6], sizes = [8, 1], strides = [1, 1]} : vector<8x8xf32> to vector<8x1xf32>
    %67 = vector.extract_strided_slice %26 {offsets = [6, 0], sizes = [1, 256], strides = [1, 1]} : vector<8x256xf32> to vector<1x256xf32>
    %68 = vector.broadcast %66 : vector<8x1xf32> to vector<8x256xf32>
    %69 = vector.broadcast %67 : vector<1x256xf32> to vector<8x256xf32>
    %70 = arith.mulf %68, %69 : vector<8x256xf32>
    %71 = arith.addf %65, %70 : vector<8x256xf32>
    %72 = vector.extract_strided_slice %3 {offsets = [0, 7], sizes = [8, 1], strides = [1, 1]} : vector<8x8xf32> to vector<8x1xf32>
    %73 = vector.extract_strided_slice %26 {offsets = [7, 0], sizes = [1, 256], strides = [1, 1]} : vector<8x256xf32> to vector<1x256xf32>
    %74 = vector.broadcast %72 : vector<8x1xf32> to vector<8x256xf32>
    %75 = vector.broadcast %73 : vector<1x256xf32> to vector<8x256xf32>
    %76 = arith.mulf %74, %75 : vector<8x256xf32>
    %77 = arith.addf %71, %76 : vector<8x256xf32>
    %cst_10 = arith.constant -1.000000e+00 : f32
    %cst_11 = arith.constant 1.000000e+00 : f32
    %78 = vector.broadcast %cst_10 : f32 to vector<8x256xf32>
    %79 = arith.maximumf %78, %77 : vector<8x256xf32>
    %80 = vector.broadcast %cst_11 : f32 to vector<8x256xf32>
    %81 = arith.minimumf %80, %79 : vector<8x256xf32>
    %c0_12 = arith.constant 0 : index
    %c0_13 = arith.constant 0 : index
    %c0_14 = arith.constant 0 : index
    %82 = vector.load %arg7[%c0_12, %c0_13, %c0_14] : memref<1x8x256xf32, #tpu.memory_space<vmem>>, vector<1x8x256xf32>
    %83 = vector.shape_cast %82 : vector<1x8x256xf32> to vector<8x256xf32>
    %84 = vector.shape_cast %81 : vector<8x256xf32> to vector<1x8x256xf32>
    tpu.vector_store %arg7[%c0_12, %c0_13, %c0_14], %84 {strides = array<i32>} : memref<1x8x256xf32, #tpu.memory_space<vmem>>, vector<1x8x256xf32>,
    return
  }
  func.func @transform_0(%arg0: i32, %arg1: i32) -> (i32, i32, i32) {
    %c0_i32 = arith.constant 0 : i32
    %c0_i32_0 = arith.constant 0 : i32
    return %arg0, %c0_i32, %arg1 : i32, i32, i32
  }
  func.func @transform_1(%arg0: i32, %arg1: i32) -> (i32, i32) {
    %c0_i32 = arith.constant 0 : i32
    %c0_i32_0 = arith.constant 0 : i32
    %c0_i32_1 = arith.constant 0 : i32
    return %c0_i32, %c0_i32_0 : i32, i32
  }
  func.func @transform_2(%arg0: i32, %arg1: i32) -> (i32, i32) {
    %c0_i32 = arith.constant 0 : i32
    %c0_i32_0 = arith.constant 0 : i32
    %c0_i32_1 = arith.constant 0 : i32
    return %c0_i32, %c0_i32_0 : i32, i32
  }
  func.func @transform_3(%arg0: i32, %arg1: i32) -> (i32, i32) {
    %c0_i32 = arith.constant 0 : i32
    %c0_i32_0 = arith.constant 0 : i32
    %c0_i32_1 = arith.constant 0 : i32
    return %c0_i32, %c0_i32_0 : i32, i32
  }
  func.func @transform_4(%arg0: i32, %arg1: i32) -> (i32, i32) {
    %c0_i32 = arith.constant 0 : i32
    %c0_i32_0 = arith.constant 0 : i32
    %c0_i32_1 = arith.constant 0 : i32
    return %c0_i32, %c0_i32_0 : i32, i32
  }
  func.func @transform_5(%arg0: i32, %arg1: i32) -> (i32, i32, i32) {
    %c0_i32 = arith.constant 0 : i32
    %c0_i32_0 = arith.constant 0 : i32
    return %arg0, %c0_i32, %arg1 : i32, i32, i32
  }
}

</mosaic_0001>

<llo_original>
// kernel: model_forward.1
$region0: #{model_forward.1}
  #allocation0 [shape = 'u32[]', space=smem, size = 0x4, offset = 0x4, fixed_abs, tag = 'smem constant byte address 0x4 - core index']
  #allocation1 [shape = 'u32[144,128]{1,0:T(1,128)}', space=vmem, size = 0x12000, scoped, tag = 'internal scratch']
  %s0 = inlined_call_operand.vmem [shape: f32[2,3,256], index: 0, kind: input, shape index: {}]
  %s1 = inlined_call_operand.vmem [shape: f32[8,3], index: 1, kind: input, shape index: {}]
  %s2 = inlined_call_operand.vmem [shape: f32[8,1], index: 2, kind: input, shape index: {}]
  %s3 = inlined_call_operand.vmem [shape: f32[8,8], index: 3, kind: input, shape index: {}]
  %s4 = inlined_call_operand.vmem [shape: f32[8,1], index: 4, kind: input, shape index: {}]
  %s5 = inlined_call_operand.vmem [shape: f32[2,8,256], index: 5, kind: output, shape index: {}]
  %s6 = sld [smem:[#allocation0]]
  $region53: #{model_forward.1} parent=0
    _
  %s8 = ssub.s32 1, %s6
  %s9 = scalar_select 0, %s8, %s6
  loop: start=0, step=1, limit=4
  $region2: #{model_forward.1} parent=0 // loop_pre_header
    _
  $region3: #{model_forward.1} parent=0 // loop_header
    %s11 = sphi 0, %s15
    %p12 = scmp.ge.s32.totalorder %s11, 4
    %s18 = sphi 0, %s30
    %s19 = sphi 0, %s26
    %s20 = sphi 0, %s18
    %s21 = sphi 0, %s19
    %s22 = sphi 0, %s20
    %s23 = sphi 0, %s21
    %s35 = sphi 0, %s37
    %s38 = sphi 0, %s35
    %s39 = sphi 0, %s38
    %s55 = sphi 0, %s39
    %s59 = sphi 0, %s59
    %s61 = sphi 0, %s59
    %s62 = sphi 0, %s61
    %s76 = sphi 0, %s62
    %s80 = sphi 0, %s80
    %s82 = sphi 0, %s80
    %s83 = sphi 0, %s82
    %s97 = sphi 0, %s83
    %s101 = sphi 0, %s101
    %s103 = sphi 0, %s101
    %s104 = sphi 0, %s103
    %s118 = sphi 0, %s104
    %s122 = sphi 0, %s122
    %s124 = sphi 0, %s122
    %s125 = sphi 0, %s124
    %s139 = sphi 0, %s125
    %s147 = sphi 0, %s149
    %s150 = sphi 0, %s147
    %s151 = sphi 0, %s150
    %s167 = sphi 0, %s151
  $region4: #{model_forward.1} parent=0 // loop_header_branch
    %14 = sbr.rel (%p12) target = $region8
  $region5: #{model_forward.1} parent=0 // loop_body
    %s16 = ssub.s32 %s11, 1
    %s17 = ssub.s32 %s11, 2
    %s24 = sadd.s32 1, %s19
    %p25 = scmp.ge.s32.totalorder %s24, 1
    %s26 = scalar_select %p25, 0, %s24
    %s27 = sadd.s32 1, %s18
    %s28 = scalar_select %p25, %s27, %s18
    %p29 = scmp.ge.s32.totalorder %s28, 2
    %s30 = scalar_select %p29, 0, %s28
    %s31 = ssub.s32 %s18, %s30
    %s32 = ssub.s32 %s19, %s26
    %s33 = sor.u32 %s31, %s32
    %p34 = scmp.eq.s32.totalorder %s33, 0
    %s36 = sadd.s32 %s35, 1
    %s37 = scalar_select %p34, %s35, %s36
    %p40 = pneg %p34
    %p41 = scmp.eq.s32.totalorder %s11, 1
    %p42 = por %p40, %p41
    %p43 = scmp.ne.s32.totalorder %s35, %s38
    %p44 = scmp.eq.s32.totalorder %s11, 0
    %p45 = por %p43, %p44
    %p46 = scmp.ne.s32.totalorder %s35, %s38
    %p47 = scmp.eq.s32.totalorder %s16, 1
    %p48 = por %p46, %p47
    %p49 = scmp.ne.s32.totalorder %s38, %s39
    %p50 = scmp.eq.s32.totalorder %s16, 0
    %p51 = por %p49, %p50
    %p52 = scmp.ne.s32.totalorder %s38, %s39
    %p53 = scmp.eq.s32.totalorder %s17, 1
    %p54 = por %p52, %p53
    %p56 = scmp.ne.s32.totalorder %s39, %s55
    %p57 = scmp.eq.s32.totalorder %s17, 0
    %p58 = por %p56, %p57
    %s60 = sadd.s32 %s59, 1
    %p63 = scmp.eq.s32.totalorder %s11, 1
    %p64 = scmp.ne.s32.totalorder %s59, %s61
    %p65 = scmp.eq.s32.totalorder %s11, 0
    %p66 = por %p64, %p65
    %p67 = scmp.ne.s32.totalorder %s59, %s61
    %p68 = scmp.eq.s32.totalorder %s16, 1
    %p69 = por %p67, %p68
    %p70 = scmp.ne.s32.totalorder %s61, %s62
    %p71 = scmp.eq.s32.totalorder %s16, 0
    %p72 = por %p70, %p71
    %p73 = scmp.ne.s32.totalorder %s61, %s62
    %p74 = scmp.eq.s32.totalorder %s17, 1
    %p75 = por %p73, %p74
    %p77 = scmp.ne.s32.totalorder %s62, %s76
    %p78 = scmp.eq.s32.totalorder %s17, 0
    %p79 = por %p77, %p78
    %s81 = sadd.s32 %s80, 1
    %p84 = scmp.eq.s32.totalorder %s11, 1
    %p85 = scmp.ne.s32.totalorder %s80, %s82
    %p86 = scmp.eq.s32.totalorder %s11, 0
    %p87 = por %p85, %p86
    %p88 = scmp.ne.s32.totalorder %s80, %s82
    %p89 = scmp.eq.s32.totalorder %s16, 1
    %p90 = por %p88, %p89
    %p91 = scmp.ne.s32.totalorder %s82, %s83
    %p92 = scmp.eq.s32.totalorder %s16, 0
    %p93 = por %p91, %p92
    %p94 = scmp.ne.s32.totalorder %s82, %s83
    %p95 = scmp.eq.s32.totalorder %s17, 1
    %p96 = por %p94, %p95
    %p98 = scmp.ne.s32.totalorder %s83, %s97
    %p99 = scmp.eq.s32.totalorder %s17, 0
    %p100 = por %p98, %p99
    %s102 = sadd.s32 %s101, 1
    %p105 = scmp.eq.s32.totalorder %s11, 1
    %p106 = scmp.ne.s32.totalorder %s101, %s103
    %p107 = scmp.eq.s32.totalorder %s11, 0
    %p108 = por %p106, %p107
    %p109 = scmp.ne.s32.totalorder %s101, %s103
    %p110 = scmp.eq.s32.totalorder %s16, 1
    %p111 = por %p109, %p110
    %p112 = scmp.ne.s32.totalorder %s103, %s104
    %p113 = scmp.eq.s32.totalorder %s16, 0
    %p114 = por %p112, %p113
    %p115 = scmp.ne.s32.totalorder %s103, %s104
    %p116 = scmp.eq.s32.totalorder %s17, 1
    %p117 = por %p115, %p116
    %p119 = scmp.ne.s32.totalorder %s104, %s118
    %p120 = scmp.eq.s32.totalorder %s17, 0
    %p121 = por %p119, %p120
    %s123 = sadd.s32 %s122, 1
    %p126 = scmp.eq.s32.totalorder %s11, 1
    %p127 = scmp.ne.s32.totalorder %s122, %s124
    %p128 = scmp.eq.s32.totalorder %s11, 0
    %p129 = por %p127, %p128
    %p130 = scmp.ne.s32.totalorder %s122, %s124
    %p131 = scmp.eq.s32.totalorder %s16, 1
    %p132 = por %p130, %p131
    %p133 = scmp.ne.s32.totalorder %s124, %s125
    %p134 = scmp.eq.s32.totalorder %s16, 0
    %p135 = por %p133, %p134
    %p136 = scmp.ne.s32.totalorder %s124, %s125
    %p137 = scmp.eq.s32.totalorder %s17, 1
    %p138 = por %p136, %p137
    %p140 = scmp.ne.s32.totalorder %s125, %s139
    %p141 = scmp.eq.s32.totalorder %s17, 0
    %p142 = por %p140, %p141
    %s143 = ssub.s32 %s18, %s30
    %s144 = ssub.s32 %s19, %s26
    %s145 = sor.u32 %s143, %s144
    %p146 = scmp.eq.s32.totalorder %s145, 0
    %s148 = sadd.s32 %s147, 1
    %s149 = scalar_select %p146, %s147, %s148
    %p152 = pneg %p146
    %p153 = scmp.eq.s32.totalorder %s11, 1
    %p154 = por %p152, %p153
    %p155 = scmp.ne.s32.totalorder %s147, %s150
    %p156 = scmp.eq.s32.totalorder %s11, 0
    %p157 = por %p155, %p156
    %p158 = scmp.ne.s32.totalorder %s147, %s150
    %p159 = scmp.eq.s32.totalorder %s16, 1
    %p160 = por %p158, %p159
    %p161 = scmp.ne.s32.totalorder %s150, %s151
    %p162 = scmp.eq.s32.totalorder %s16, 0
    %p163 = por %p161, %p162
    %p164 = scmp.ne.s32.totalorder %s150, %s151
    %p165 = scmp.eq.s32.totalorder %s17, 1
    %p166 = por %p164, %p165
    %p168 = scmp.ne.s32.totalorder %s151, %s167
    %p169 = scmp.eq.s32.totalorder %s17, 0
    %p170 = por %p168, %p169
    %p171 = scmp.le.s32.totalorder 1, %s11
    %p172 = scmp.lt.s32.totalorder %s11, 3
    %p173 = pnand %p171, %p172
    %p174 = pneg %p173
    // Predicated region
    $region9: #{model_forward.1} parent=5 // pred_check
      _
    $region10: #{model_forward.1} parent=5 // pred_check_branch
      %176 = sbr.rel (%p173) target = $region12
    $region11: #{model_forward.1} parent=5 // pred_region
      %s177 = ssub.s32 %s11, 1
      // Predicated region
      $region13: #{model_forward.1} parent=11 // pred_check
        %p178 = pneg %p72
      $region14: #{model_forward.1} parent=11 // pred_check_branch
        %180 = sbr.rel (%p178) target = $region16
      $region15: #{model_forward.1} parent=11 // pred_region
        _
      $region16: #{model_forward.1} parent=11 // pred_fallthru
        _
      // Predicated region
      $region17: #{model_forward.1} parent=11 // pred_check
        %p181 = pneg %p93
      $region18: #{model_forward.1} parent=11 // pred_check_branch
        %183 = sbr.rel (%p181) target = $region20
      $region19: #{model_forward.1} parent=11 // pred_region
        _
      $region20: #{model_forward.1} parent=11 // pred_fallthru
        _
      // Predicated region
      $region21: #{model_forward.1} parent=11 // pred_check
        %p184 = pneg %p114
      $region22: #{model_forward.1} parent=11 // pred_check_branch
        %186 = sbr.rel (%p184) target = $region24
      $region23: #{model_forward.1} parent=11 // pred_region
        _
      $region24: #{model_forward.1} parent=11 // pred_fallthru
        _
      // Predicated region
      $region25: #{model_forward.1} parent=11 // pred_check
        %p187 = pneg %p135
      $region26: #{model_forward.1} parent=11 // pred_check_branch
        %189 = sbr.rel (%p187) target = $region28
      $region27: #{model_forward.1} parent=11 // pred_region
        _
      $region28: #{model_forward.1} parent=11 // pred_fallthru
        _
    $region12: #{model_forward.1} parent=5 // pred_fallthru
      _
    %p190 = scmp.lt.s32.totalorder %s11, 2
    // Predicated region
    $region29: #{model_forward.1} parent=5 // pred_check
      %p191 = pneg %p190
    $region30: #{model_forward.1} parent=5 // pred_check_branch
      %193 = sbr.rel (%p191) target = $region32
    $region31: #{model_forward.1} parent=5 // pred_region
      // Predicated region
      $region33: #{model_forward.1} parent=31 // pred_check
        %p194 = pneg %p45
      $region34: #{model_forward.1} parent=31 // pred_check_branch
        %196 = sbr.rel (%p194) target = $region36
      $region35: #{model_forward.1} parent=31 // pred_region
        %s197 = smul.u32 2, %s19
        %p198 = scmp.lt.s32.totalorder %s18, 1
        %s199 = scalar_select %p198, %s18, 1
        %p200 = scmp.lt.s32.totalorder %s197, 1
        %s201 = scalar_select %p200, %s197, 1
        %s202 = smul.addr %s199, 2
        %s203 = sadd.s32 %s201, %s202
        %s204 = smul.addr %s203, 4
        %s205 = scalar_lea.vmem %s0, %s204
        %s206 = smul.u32 2, %s19
      $region36: #{model_forward.1} parent=31 // pred_fallthru
        _
    $region32: #{model_forward.1} parent=5 // pred_fallthru
      _
    %p207 = scmp.le.s32.totalorder 1, %s11
    %p208 = scmp.lt.s32.totalorder %s11, 3
    %p209 = pnand %p207, %p208
    %p210 = pneg %p209
    // Predicated region
    $region37: #{model_forward.1} parent=5 // pred_check
      _
    $region38: #{model_forward.1} parent=5 // pred_check_branch
      %212 = sbr.rel (%p209) target = $region40
    $region39: #{model_forward.1} parent=5 // pred_region
      %s213 = ssub.s32 %s11, 1
      %s214 = smul.u32 2, %s21
      %p215 = scmp.lt.s32.totalorder %s20, 1
      %s216 = scalar_select %p215, %s20, 1
      %p217 = scmp.lt.s32.totalorder %s214, 1
      %s218 = scalar_select %p217, %s214, 1
      %s219 = smul.addr %s216, 2
      %s220 = sadd.s32 %s218, %s219
      %s221 = smul.addr %s220, 4
      %s222 = scalar_lea.vmem %s0, %s221
      %p223 = pneg %p51
      %p224 = pneg %p48
      %p225 = pneg %p72
      %p226 = pneg %p69
      %p227 = pneg %p93
      %p228 = pneg %p90
      %p229 = pneg %p114
      %p230 = pneg %p111
      %p231 = pneg %p135
      %p232 = pneg %p132
      %p233 = pneg %p163
      %p234 = pneg %p160
      %s235 = smul.u32 2, %s21
      %p236 = scmp.lt.s32.totalorder %s20, 1
      %s237 = scalar_select %p236, %s20, 1
      %p238 = scmp.lt.s32.totalorder %s235, 1
      %s239 = scalar_select %p238, %s235, 1
      %s240 = smul.addr %s237, 2
      %s241 = sadd.s32 %s239, %s240
      %s242 = smul.addr %s241, 8
      %s243 = scalar_lea.vmem %s5, %s242
      %s244 = smul.u32 2, %s21
      %p245 = scmp.lt.s32.totalorder %s20, 1
      %s246 = scalar_select %p245, %s20, 1
      %p247 = scmp.lt.s32.totalorder %s244, 1
      %s248 = scalar_select %p247, %s244, 1
      %s249 = smul.addr %s246, 2
      %s250 = sadd.s32 %s248, %s249
      %s251 = smul.addr %s250, 4
      %s252 = scalar_lea.vmem %s0, %s251
      %s253 = smul.u32 2, %s21
      %s254 = smul.u32 2, %s21
      %p255 = scmp.lt.s32.totalorder %s20, 1
      %s256 = scalar_select %p255, %s20, 1
      %p257 = scmp.lt.s32.totalorder %s254, 1
      %s258 = scalar_select %p257, %s254, 1
      %s259 = smul.addr %s256, 2
      %s260 = sadd.s32 %s258, %s259
      %s261 = smul.addr %s260, 8
      %s262 = scalar_lea.vmem %s5, %s261
      %s263 = smul.u32 2, %s21
      %v264 = vld [vmem:[%s252] sm:$0x77]
      %v265 = vld [vmem:[%s1] sm:$0xff]
      %v266 = vld [vmem:[%s3] sm:$0xff]
      %v267 = vld [vmem:[%s2] sm:$0xff]
      %269 = vset.pattern.permute.xlu0 0
      %270 = vperm.xlu0 %269, %v267
      %v271 = vpop.permute.xlu0 %270
      %274 = vset.pattern.permute.xlu0 0
      %275 = vperm.xlu0 %274, %v265
      %v276 = vpop.permute.xlu0 %275
      %v279 = vlaneseq
      %v280 = vshrl.u32 %v279, 7
      %v281 = vsub.s32 0, %v280
      %v282 = vrot.slane %v264, %v281
      %v283 = vlaneseq
      %v284 = vshrl.u32 %v283, 7
      %v285 = vsub.s32 4, %v284
      %v286 = vrot.slane %v264, %v285
      %v289 = vlaneseq
      %v290 = vshrl.u32 %v289, 7
      %v291 = vsub.s32 0, %v290
      %v292 = vrot.slane %v282, %v291
      %v293 = vlaneseq
      %v294 = vshrl.u32 %v293, 7
      %v295 = vsub.s32 0, %v294
      %v296 = vrot.slane %v286, %v295
      %v297 = vmul.f32 %v276, %v292
      %v298 = vmul.f32 %v276, %v296
      %v299 = vadd.f32 %v271, %v297
      %v300 = vadd.f32 %v271, %v298
      %301 = vset.pattern.permute.xlu0 1
      %302 = vperm.xlu0 %301, %v265
      %v303 = vpop.permute.xlu0 %302
      %v305 = vlaneseq
      %v306 = vshrl.u32 %v305, 7
      %v307 = vsub.s32 1, %v306
      %v308 = vrot.slane %v264, %v307
      %v309 = vlaneseq
      %v310 = vshrl.u32 %v309, 7
      %v311 = vsub.s32 5, %v310
      %v312 = vrot.slane %v264, %v311
      %v315 = vlaneseq
      %v316 = vshrl.u32 %v315, 7
      %v317 = vsub.s32 1, %v316
      %v318 = vrot.slane %v308, %v317
      %v319 = vlaneseq
      %v320 = vshrl.u32 %v319, 7
      %v321 = vsub.s32 1, %v320
      %v322 = vrot.slane %v312, %v321
      %v323 = vmul.f32 %v303, %v318
      %v324 = vmul.f32 %v303, %v322
      %v325 = vadd.f32 %v299, %v323
      %v326 = vadd.f32 %v300, %v324
      %327 = vset.pattern.permute.xlu0 2
      %328 = vperm.xlu0 %327, %v265
      %v329 = vpop.permute.xlu0 %328
      %v331 = vlaneseq
      %v332 = vshrl.u32 %v331, 7
      %v333 = vsub.s32 2, %v332
      %v334 = vrot.slane %v264, %v333
      %v335 = vlaneseq
      %v336 = vshrl.u32 %v335, 7
      %v337 = vsub.s32 6, %v336
      %v338 = vrot.slane %v264, %v337
      %v341 = vlaneseq
      %v342 = vshrl.u32 %v341, 7
      %v343 = vsub.s32 2, %v342
      %v344 = vrot.slane %v334, %v343
      %v345 = vlaneseq
      %v346 = vshrl.u32 %v345, 7
      %v347 = vsub.s32 2, %v346
      %v348 = vrot.slane %v338, %v347
      %v349 = vmul.f32 %v329, %v344
      %v350 = vmul.f32 %v329, %v348
      %v351 = vadd.f32 %v325, %v349
      %v352 = vadd.f32 %v326, %v350
      %v353 = vmax.f32 %v351, 0.0
      %v354 = vmax.f32 %v352, 0.0
      %v355 = vld [vmem:[%s4] sm:$0xff]
      %357 = vset.pattern.permute.xlu0 0
      %358 = vperm.xlu0 %357, %v355
      %v359 = vpop.permute.xlu0 %358
      %362 = vset.pattern.permute.xlu0 0
      %363 = vperm.xlu0 %362, %v266
      %v364 = vpop.permute.xlu0 %363
      %v366 = vlaneseq
      %v367 = vshrl.u32 %v366, 7
      %v368 = vsub.s32 0, %v367
      %v369 = vrot.slane %v353, %v368
      %v370 = vlaneseq
      %v371 = vshrl.u32 %v370, 7
      %v372 = vsub.s32 0, %v371
      %v373 = vrot.slane %v354, %v372
      %v374 = vmul.f32 %v364, %v369
      %v375 = vmul.f32 %v364, %v373
      %v376 = vadd.f32 %v359, %v374
      %v377 = vadd.f32 %v359, %v375
      %378 = vset.pattern.permute.xlu0 1
      %379 = vperm.xlu0 %378, %v266
      %v380 = vpop.permute.xlu0 %379
      %v382 = vlaneseq
      %v383 = vshrl.u32 %v382, 7
      %v384 = vsub.s32 1, %v383
      %v385 = vrot.slane %v353, %v384
      %v386 = vlaneseq
      %v387 = vshrl.u32 %v386, 7
      %v388 = vsub.s32 1, %v387
      %v389 = vrot.slane %v354, %v388
      %v390 = vmul.f32 %v380, %v385
      %v391 = vmul.f32 %v380, %v389
      %v392 = vadd.f32 %v376, %v390
      %v393 = vadd.f32 %v377, %v391
      %394 = vset.pattern.permute.xlu0 2
      %395 = vperm.xlu0 %394, %v266
      %v396 = vpop.permute.xlu0 %395
      %v398 = vlaneseq
      %v399 = vshrl.u32 %v398, 7
      %v400 = vsub.s32 2, %v399
      %v401 = vrot.slane %v353, %v400
      %v402 = vlaneseq
      %v403 = vshrl.u32 %v402, 7
      %v404 = vsub.s32 2, %v403
      %v405 = vrot.slane %v354, %v404
      %v406 = vmul.f32 %v396, %v401
      %v407 = vmul.f32 %v396, %v405
      %v408 = vadd.f32 %v392, %v406
      %v409 = vadd.f32 %v393, %v407
      %410 = vset.pattern.permute.xlu0 3
      %411 = vperm.xlu0 %410, %v266
      %v412 = vpop.permute.xlu0 %411
      %v414 = vlaneseq
      %v415 = vshrl.u32 %v414, 7
      %v416 = vsub.s32 3, %v415
      %v417 = vrot.slane %v353, %v416
      %v418 = vlaneseq
      %v419 = vshrl.u32 %v418, 7
      %v420 = vsub.s32 3, %v419
      %v421 = vrot.slane %v354, %v420
      %v422 = vmul.f32 %v412, %v417
      %v423 = vmul.f32 %v412, %v421
      %v424 = vadd.f32 %v408, %v422
      %v425 = vadd.f32 %v409, %v423
      %426 = vset.pattern.permute.xlu0 4
      %427 = vperm.xlu0 %426, %v266
      %v428 = vpop.permute.xlu0 %427
      %v430 = vlaneseq
      %v431 = vshrl.u32 %v430, 7
      %v432 = vsub.s32 4, %v431
      %v433 = vrot.slane %v353, %v432
      %v434 = vlaneseq
      %v435 = vshrl.u32 %v434, 7
      %v436 = vsub.s32 4, %v435
      %v437 = vrot.slane %v354, %v436
      %v438 = vmul.f32 %v428, %v433
      %v439 = vmul.f32 %v428, %v437
      %v440 = vadd.f32 %v424, %v438
      %v441 = vadd.f32 %v425, %v439
      %442 = vset.pattern.permute.xlu0 5
      %443 = vperm.xlu0 %442, %v266
      %v444 = vpop.permute.xlu0 %443
      %v446 = vlaneseq
      %v447 = vshrl.u32 %v446, 7
      %v448 = vsub.s32 5, %v447
      %v449 = vrot.slane %v353, %v448
      %v450 = vlaneseq
      %v451 = vshrl.u32 %v450, 7
      %v452 = vsub.s32 5, %v451
      %v453 = vrot.slane %v354, %v452
      %v454 = vmul.f32 %v444, %v449
      %v455 = vmul.f32 %v444, %v453
      %v456 = vadd.f32 %v440, %v454
      %v457 = vadd.f32 %v441, %v455
      %458 = vset.pattern.permute.xlu0 6
      %459 = vperm.xlu0 %458, %v266
      %v460 = vpop.permute.xlu0 %459
      %v462 = vlaneseq
      %v463 = vshrl.u32 %v462, 7
      %v464 = vsub.s32 6, %v463
      %v465 = vrot.slane %v353, %v464
      %v466 = vlaneseq
      %v467 = vshrl.u32 %v466, 7
      %v468 = vsub.s32 6, %v467
      %v469 = vrot.slane %v354, %v468
      %v470 = vmul.f32 %v460, %v465
      %v471 = vmul.f32 %v460, %v469
      %v472 = vadd.f32 %v456, %v470
      %v473 = vadd.f32 %v457, %v471
      %474 = vset.pattern.permute.xlu0 7
      %475 = vperm.xlu0 %474, %v266
      %v476 = vpop.permute.xlu0 %475
      %v478 = vlaneseq
      %v479 = vshrl.u32 %v478, 7
      %v480 = vsub.s32 7, %v479
      %v481 = vrot.slane %v353, %v480
      %v482 = vlaneseq
      %v483 = vshrl.u32 %v482, 7
      %v484 = vsub.s32 7, %v483
      %v485 = vrot.slane %v354, %v484
      %v486 = vmul.f32 %v476, %v481
      %v487 = vmul.f32 %v476, %v485
      %v488 = vadd.f32 %v472, %v486
      %v489 = vadd.f32 %v473, %v487
      %v490 = vmax.f32 %v488, -1.0
      %v491 = vmax.f32 %v489, -1.0
      %v492 = vmin.f32 %v490, 1.0
      %v493 = vmin.f32 %v491, 1.0
      %494 = vst [vmem:[%s262] sm:$0xff] %v492
      %495 = vst [vmem:[%s262 + $0x8] sm:$0xff] %v493
      %s496 = smul.u32 2, %s21
      %p497 = scmp.lt.s32.totalorder %s20, 1
      %s498 = scalar_select %p497, %s20, 1
      %p499 = scmp.lt.s32.totalorder %s496, 1
      %s500 = scalar_select %p499, %s496, 1
      %s501 = smul.addr %s498, 2
      %s502 = sadd.s32 %s500, %s501
      %s503 = smul.addr %s502, 8
      %s504 = scalar_lea.vmem %s5, %s503
      // Predicated region
      $region41: #{model_forward.1} parent=39 // pred_check
        %p505 = pneg %p160
      $region42: #{model_forward.1} parent=39 // pred_check_branch
        %507 = sbr.rel (%p505) target = $region44
      $region43: #{model_forward.1} parent=39 // pred_region
        %s508 = smul.u32 2, %s21
      $region44: #{model_forward.1} parent=39 // pred_fallthru
        _
    $region40: #{model_forward.1} parent=5 // pred_fallthru
      _
    %p509 = scmp.le.s32.totalorder 2, %s11
    // Predicated region
    $region45: #{model_forward.1} parent=5 // pred_check
      %p510 = pneg %p509
    $region46: #{model_forward.1} parent=5 // pred_check_branch
      %512 = sbr.rel (%p510) target = $region48
    $region47: #{model_forward.1} parent=5 // pred_region
      %s513 = ssub.s32 %s11, 2
      // Predicated region
      $region49: #{model_forward.1} parent=47 // pred_check
        %p514 = pneg %p166
      $region50: #{model_forward.1} parent=47 // pred_check_branch
        %516 = sbr.rel (%p514) target = $region52
      $region51: #{model_forward.1} parent=47 // pred_region
        %s517 = smul.u32 2, %s23
        %p518 = scmp.lt.s32.totalorder %s22, 1
        %s519 = scalar_select %p518, %s22, 1
        %p520 = scmp.lt.s32.totalorder %s517, 1
        %s521 = scalar_select %p520, %s517, 1
        %s522 = smul.addr %s519, 2
        %s523 = sadd.s32 %s521, %s522
        %s524 = smul.addr %s523, 8
        %s525 = scalar_lea.vmem %s5, %s524
      $region52: #{model_forward.1} parent=47 // pred_fallthru
        _
    $region48: #{model_forward.1} parent=5 // pred_fallthru
      _
  $region6: #{model_forward.1} parent=0 // loop_footer
    %s15 = sadd.s32 1, %s11
  $region7: #{model_forward.1} parent=0 // loop_footer_branch
    %10 = sbr.rel target = $region3
  $region8: #{model_forward.1} parent=0 // loop_exit
    _

</llo_original>
